<compile_context>
chip_gen: v5e
topology: v5e:2x2
jax: 0.10.0
libtpu: 0.0.40
codegen_flags: <defaults>
</compile_context>

<pallas_src>
import functools

import jax
import jax.numpy as jnp
from jax.experimental import pallas as pl
from jax.experimental.pallas import tpu as pltpu


_VMEM_LIMIT = 32 * 1024 * 1024   # explicit scoped-VMEM cap; safe on v5e/v6e/v7x
_ENC_TILE_ROWS = 2048            # bf16 x tile ~1 MiB; whole pass-1 step ~3 MiB dbl-buffered


def _round_up(x, m):
    return (x + m - 1) // m * m


# ----------------------------- Pallas kernels -----------------------------

def _enc_pass1_kernel(x_ref, w_ref, y_ref, stat_ref):
    """Pass 1: 1x1 conv as a bf16 MXU matmul; emit per-tile BN partial sums.

    No conv bias (it cancels exactly under training-mode BatchNorm) and no
    padded-row mask (zero-padded rows contribute exactly 0 to both sums).
    Stats stay f32; y is written back as bf16 to halve the inter-pass stream.
    """
    y = jnp.dot(x_ref[...], w_ref[...], preferred_element_type=jnp.float32)
    y_ref[...] = y.astype(y_ref.dtype)
    stat_ref[...] = jnp.concatenate(
        [jnp.sum(y, axis=0, keepdims=True),
         jnp.sum(y * y, axis=0, keepdims=True)], axis=0)[None]


def _enc_pass2_kernel(y_ref, sc_ref, sh_ref, o_ref):
    """Pass 2: folded BatchNorm affine (scale/shift FMA) + LeakyReLU(0.01).

    Operates on a lane-dense (rows/pack, pack*cout=128) slab so stores are
    full-width vst instead of masked vst.msk.
    """
    z = y_ref[...].astype(jnp.float32) * sc_ref[...] + sh_ref[...]
    o_ref[...] = jnp.where(z >= 0.0, z, 0.01 * z)


def _cls_kernel(a_ref, sel_ref, q_ref, o_ref, *, res, roi_tile):
    """Reconstruction distance for one ROI tile.

    a_ref is the grid-invariant A_cat = [rho*M^-1*S^T S - I]_w concatenated
    along lanes to (c, ncls*c) in bf16 (hoisted out of the grid).  The
    per-class channel reduction is a matmul against a static 0/1 block
    selector instead of lane-sparse 64-wide slices.
    """
    d = jnp.dot(q_ref[...], a_ref[...], preferred_element_type=jnp.float32)
    d2 = d * d                                                   # (roi_tile*res, ncls*c)
    e = jnp.sum(d2.reshape(roi_tile, res, d2.shape[-1]), axis=1)  # (roi_tile, ncls*c)
    o_ref[...] = jnp.dot(e, sel_ref[...], preferred_element_type=jnp.float32)


# ------------------------------ Wrappers -----------------------------------

def encoder_apply(x_nchw, conv_w_bf16, bn_gamma, bn_beta):
    """1x1 Conv + training-mode BatchNorm + LeakyReLU.

    Returns the flat channels-last pixel-major (N*H*W, cout) f32 slab; callers
    build (way, shot*res, c) / (roi*res, c) views with free reshapes (no NCHW
    round-trip).
    """
    n, cin, h, w = x_nchw.shape
    cout = conv_w_bf16.shape[1]
    rows = n * h * w

    # bf16 cast fused into the one unavoidable NCHW->pixel-major transpose:
    # halves the dominant pass-1 input stream.
    x_flat = jnp.transpose(x_nchw, (0, 2, 3, 1)).reshape(rows, cin).astype(jnp.bfloat16)

    tile = min(_ENC_TILE_ROWS, _round_up(rows, 32))
    padded = _round_up(rows, tile)
    if padded != rows:
        x_flat = jnp.pad(x_flat, ((0, padded - rows), (0, 0)))
    n_tiles = padded // tile

    # Pass 1: matmul + per-tile BN partial stats.  Fully "parallel" grid
    # (each step owns its y block and its stats block) -> v7x megacore split.
    y_pad, partial = pl.pallas_call(
        _enc_pass1_kernel,
        out_shape=(jax.ShapeDtypeStruct((padded, cout), jnp.bfloat16),
                   jax.ShapeDtypeStruct((n_tiles, 2, cout), jnp.float32)),
        grid=(n_tiles,),
        in_specs=[pl.BlockSpec((tile, cin), lambda i: (i, 0)),
                  pl.BlockSpec((cin, cout), lambda i: (0, 0))],
        out_specs=[pl.BlockSpec((tile, cout), lambda i: (i, 0)),
                   pl.BlockSpec((1, 2, cout), lambda i: (i, 0, 0))],
        compiler_params=pltpu.CompilerParams(
            dimension_semantics=("parallel",), vmem_limit_bytes=_VMEM_LIMIT),
    )(x_flat, conv_w_bf16)

    # Tiny cross-tile stats reduction + BN parameter fold in plain XLA.
    stats = jnp.sum(partial, axis=0)                 # (2, cout)
    mean = stats[0] / rows
    var = stats[1] / rows - mean * mean
    bn_scale = bn_gamma * jax.lax.rsqrt(var + 1e-5)
    bn_shift = bn_beta - mean * bn_scale

    # Pass 2 on a lane-dense view: pack 2 pixels per 128-lane row (cout=64).
    pack = 2 if (2 * cout == 128 and tile % 2 == 0) else 1
    lanes = pack * cout
    tile2 = tile // pack
    y2 = y_pad.reshape(padded // pack, lanes)        # contiguous reshape (free)
    sc = jnp.tile(bn_scale, pack).reshape(1, lanes)  # channel = lane % cout
    sh = jnp.tile(bn_shift, pack).reshape(1, lanes)

    out = pl.pallas_call(
        _enc_pass2_kernel,
        out_shape=jax.ShapeDtypeStruct((padded // pack, lanes), jnp.float32),
        grid=(n_tiles,),
        in_specs=[pl.BlockSpec((tile2, lanes), lambda i: (i, 0)),
                  pl.BlockSpec((1, lanes), lambda i: (0, 0)),
                  pl.BlockSpec((1, lanes), lambda i: (0, 0))],
        out_specs=pl.BlockSpec((tile2, lanes), lambda i: (i, 0)),
        compiler_params=pltpu.CompilerParams(
            dimension_semantics=("parallel",), vmem_limit_bytes=_VMEM_LIMIT),
    )(y2, sc, sh)

    return out.reshape(padded, cout)[:rows]


def cls_scores_raw(q_flat_bf16, a_cat_bf16, sel, *, roi, res, c, ncls):
    """Per-ROI, per-class raw sum_{pixels,channels} (q_bar - q)^2."""
    max_roi_tile = 128
    if roi <= max_roi_tile:
        roi_tile, roi_pad = roi, roi
    else:
        roi_tile = max_roi_tile
        roi_pad = _round_up(roi, roi_tile)
    if roi_pad != roi:
        q_flat_bf16 = jnp.pad(q_flat_bf16, ((0, (roi_pad - roi) * res), (0, 0)))
    n_tiles = roi_pad // roi_tile

    raw = pl.pallas_call(
        functools.partial(_cls_kernel, res=res, roi_tile=roi_tile),
        out_shape=jax.ShapeDtypeStruct((roi_pad, ncls), jnp.float32),
        grid=(n_tiles,),
        in_specs=[pl.BlockSpec((c, ncls * c), lambda i: (0, 0)),       # grid-invariant
                  pl.BlockSpec((ncls * c, ncls), lambda i: (0, 0)),    # grid-invariant
                  pl.BlockSpec((roi_tile * res, c), lambda i: (i, 0))],
        out_specs=pl.BlockSpec((roi_tile, ncls), lambda i: (i, 0)),
        compiler_params=pltpu.CompilerParams(
            dimension_semantics=("parallel",), vmem_limit_bytes=_VMEM_LIMIT),
    )(a_cat_bf16, sel, q_flat_bf16)
    return raw[:roi]


def fr_predict_head_simple_forward(params, support, bg, query, x, *, way, shot,
                                    woodbury=True):
    P = jax.lax.Precision.HIGHEST
    if x.ndim == 4:
        assert tuple(x.shape[2:]) == (1, 1)
    x2 = x.reshape(x.shape[0], -1)
    # (roi, 64)@(64, 12): launch/DMA overhead would dominate a Pallas call, so
    # it stays in XLA per the perf review.
    bbox_deltas = jnp.dot(x2, params["bbox_w"], precision=P) + params["bbox_b"]

    conv_w_bf16 = params["conv_w"].astype(jnp.bfloat16)   # one-time weight cast
    enc = lambda t: encoder_apply(t, conv_w_bf16, params["bn_gamma"], params["bn_beta"])
    # BatchNorm batch statistics are per-encoder-call (training mode), so each
    # tensor gets its own two-pass stats.
    _, _, h, w_ = support.shape
    resolution = h * w_
    c = params["conv_w"].shape[1]
    ncls = way + 1
    roi_num = query.shape[0]

    sup_flat = enc(support)     # (way*shot*res, c) pixel-major
    bg_flat = enc(bg)
    q_flat = enc(query)         # (roi*res, c)     pixel-major

    # Free reshapes of the pixel-major slabs (no transposes).
    sup = sup_flat.reshape(way, shot * resolution, c)
    bgp = bg_flat.reshape(way, shot, resolution, c).mean(axis=0).reshape(
        1, shot * resolution, c)
    support_bg = jnp.concatenate([bgp, sup], axis=0)       # (way+1, shot*res, c)

    alpha, beta_p = params["r"][0], params["r"][1]
    lam = (shot * resolution) / c * jnp.exp(alpha) + 1e-6
    rho = jnp.exp(beta_p)

    if not woodbury:
        # TODO(synk): non-Woodbury branch not implemented (module always uses Woodubry=True).
        raise NotImplementedError("Only the Woodbury path is implemented.")

    # Tiny prologue (Gram, 64x64 batched inverse, hat, A_cat) in plain XLA —
    # hoisted out of the ROI grid so the cls kernel sees one bf16 operand.
    # TODO(synk): batched (way+1, 64, 64) matrix inverse has no clean Pallas equivalent.
    st_s = jnp.einsum("wmc,wmd->wcd", support_bg, support_bg, precision=P)
    eye = jnp.eye(c, dtype=jnp.float32)
    m_inv = jnp.linalg.inv(eye[None] * lam + st_s)
    hat = jnp.einsum("wij,wjk->wik", m_inv, st_s, precision=P)
    a = rho * hat - eye[None]                                # (ncls, c, c)
    a_cat = jnp.transpose(a, (1, 0, 2)).reshape(c, ncls * c).astype(jnp.bfloat16)

    # Static 0/1 block selector: column w sums the channels of class w.
    sel = ((jnp.arange(ncls * c) // c)[:, None]
           == jnp.arange(ncls)[None, :]).astype(jnp.float32)

    raw = cls_scores_raw(q_flat.astype(jnp.bfloat16), a_cat, sel,
                         roi=roi_num, res=resolution, c=c, ncls=ncls)
    scores = raw * (-(jnp.exp(params["scale"][0]) / float(resolution ** 2)))
    return scores, bbox_deltas, sup


# -------------------------- pure-JAX reference ------------------------------

def _reference_forward(params, support, bg, query, x, *, way, shot):
    P = jax.lax.Precision.HIGHEST

    def enc(t):
        n, cin, h, w = t.shape
        xf = jnp.transpose(t, (0, 2, 3, 1)).reshape(-1, cin)
        y = jnp.matmul(xf, params["conv_w"], precision=P) + params["conv_b"]
        mean = y.mean(0, keepdims=True)
        var = ((y - mean) ** 2).mean(0, keepdims=True)
        y = (y - mean) / jnp.sqrt(var + 1e-5) * params["bn_gamma"] + params["bn_beta"]
        y = jnp.where(y >= 0.0, y, 0.01 * y)
        return jnp.transpose(y.reshape(n, h, w, -1), (0, 3, 1, 2))

    x2 = x.reshape(x.shape[0], -1)
    bbox = jnp.matmul(x2, params["bbox_w"], precision=P) + params["bbox_b"]
    support = enc(support); bg = enc(bg); query = enc(query)
    roi_num = query.shape[0]
    _, c, h, w_ = support.shape
    res = h * w_
    sup = jnp.transpose(support.reshape(way, shot, c, res), (0, 1, 3, 2)).reshape(way, shot * res, c)
    bgp = jnp.transpose(bg.reshape(way, shot, c, res), (0, 1, 3, 2)).mean(0).reshape(1, shot * res, c)
    sbg = jnp.concatenate([bgp, sup], axis=0)
    q = jnp.transpose(query, (0, 2, 3, 1)).reshape(roi_num * res, c)
    lam = (shot * res) / c * jnp.exp(params["r"][0]) + 1e-6
    rho = jnp.exp(params["r"][1])
    sts = jnp.einsum("wmc,wmd->wcd", sbg, sbg, precision=P)
    m_inv = jnp.linalg.inv(jnp.eye(c)[None] * lam + sts)
    hat = jnp.matmul(m_inv, sts, precision=P)
    q_bar = jnp.matmul(q[None], hat, precision=P) * rho
    eu = jnp.sum((q_bar - q[None]) ** 2, axis=2).T / res
    metric = (-eu).reshape(roi_num, res, way + 1).mean(1)
    return metric * jnp.exp(params["scale"][0]), bbox, sup


# --------------------------------- main --------------------------------------

if __name__ == "__main__":
    way, shot = 2, 2
    representation_size = 64
    num_classes = 3
    cin, cout = 256, 64
    h = w = 4
    roi_num = 4

    key = jax.random.PRNGKey(0)
    k = jax.random.split(key, 8)
    params = dict(
        conv_w=0.05 * jax.random.normal(k[0], (cin, cout), jnp.float32),
        conv_b=0.05 * jax.random.normal(k[1], (cout,), jnp.float32),
        bn_gamma=jnp.ones((cout,), jnp.float32),
        bn_beta=jnp.zeros((cout,), jnp.float32),
        bbox_w=0.05 * jax.random.normal(k[2], (representation_size, num_classes * 4), jnp.float32),
        bbox_b=0.05 * jax.random.normal(k[3], (num_classes * 4,), jnp.float32),
        r=jnp.zeros((2,), jnp.float32),
        scale=jnp.array([1.0], jnp.float32),
    )

    support = jax.random.normal(k[4], (way * shot, cin, h, w), jnp.float32)
    bg = jax.random.normal(k[5], (way * shot, cin, h, w), jnp.float32)
    query = jax.random.normal(k[6], (roi_num, cin, h, w), jnp.float32)
    x = jax.random.normal(k[7], (roi_num, representation_size, 1, 1), jnp.float32)

    scores, bbox_deltas, sup_out = fr_predict_head_simple_forward(
        params, support, bg, query, x, way=way, shot=shot, woodbury=True)
    jax.block_until_ready((scores, bbox_deltas, sup_out))

    ref_scores, ref_bbox, ref_sup = _reference_forward(
        params, support, bg, query, x, way=way, shot=shot)

    assert scores.shape == (roi_num, way + 1)
    assert bbox_deltas.shape == (roi_num, num_classes * 4)
    assert sup_out.shape == (way, shot * h * w, cout)
    # bbox path is pure f32; encoder / cls matmuls use bf16 operands and a bf16
    # inter-pass y buffer (f32 accumulation / f32 BN stats), so feature-
    # dependent outputs get a slightly looser tolerance.
    assert jnp.allclose(bbox_deltas, ref_bbox, rtol=1e-2, atol=1e-2)
    assert jnp.allclose(sup_out, ref_sup, rtol=2e-2, atol=2e-2)
    assert jnp.allclose(scores, ref_scores, rtol=3e-2, atol=3e-2)

    print("KERNEL_OK")
</pallas_src>

<mosaic_0001>
module attributes {stable_mosaic.version = 11 : i64} {
  func.func @_enc_pass1_kernel(%arg0: i32, %arg1: memref<64x256xbf16, #tpu.memory_space<vmem>>, %arg2: memref<256x64xbf16, #tpu.memory_space<vmem>>, %arg3: memref<64x64xbf16, #tpu.memory_space<vmem>>, %arg4: memref<1x2x64xf32, #tpu.memory_space<vmem>>) attributes {dimension_semantics = [#tpu.dimension_semantics<parallel>], iteration_bounds = array<i64: 1>, scalar_prefetch = 0 : i64, scratch_operands = 0 : i64, tpu.core_type = #tpu.core_type<tc>, window_params = [{transform_indices = @transform_0, window_bounds = array<i64: 64, 256>}, {pipeline_mode = #tpu.pipeline_mode<synchronous>, transform_indices = @transform_1, window_bounds = array<i64: 256, 64>}, {transform_indices = @transform_2, window_bounds = array<i64: 64, 64>}, {transform_indices = @transform_3, window_bounds = array<i64: 1, 2, 64>}]} {
    %c0 = arith.constant 0 : index
    %c0_0 = arith.constant 0 : index
    %0 = vector.load %arg1[%c0, %c0_0] : memref<64x256xbf16, #tpu.memory_space<vmem>>, vector<64x256xbf16>
    %c0_1 = arith.constant 0 : index
    %c0_2 = arith.constant 0 : index
    %1 = vector.load %arg2[%c0_1, %c0_2] : memref<256x64xbf16, #tpu.memory_space<vmem>>, vector<256x64xbf16>
    %cst = arith.constant dense<0.000000e+00> : vector<64x64xf32>
    %2 = tpu.matmul %0, %1, %cst {dimension_numbers = #tpu.dot_dimension_numbers<[1], [0], [0], [1], [0, 0, 1, 1], [], []>} : vector<64x256xbf16>, vector<256x64xbf16>, vector<64x64xf32> -> vector<64x64xf32>
    %3 = arith.truncf %2 : vector<64x64xf32> to vector<64x64xbf16>
    %c0_3 = arith.constant 0 : index
    %c0_4 = arith.constant 0 : index
    %4 = vector.load %arg3[%c0_3, %c0_4] : memref<64x64xbf16, #tpu.memory_space<vmem>>, vector<64x64xbf16>
    tpu.vector_store %arg3[%c0_3, %c0_4], %3 {strides = array<i32>} : memref<64x64xbf16, #tpu.memory_space<vmem>>, vector<64x64xbf16>,
    %cst_5 = arith.constant dense<0.000000e+00> : vector<64xf32>
    %5 = vector.multi_reduction <add>, %2, %cst_5 [0] : vector<64x64xf32> to vector<64xf32>
    %6 = vector.shape_cast %5 : vector<64xf32> to vector<1x64xf32>
    %7 = arith.mulf %2, %2 : vector<64x64xf32>
    %cst_6 = arith.constant dense<0.000000e+00> : vector<64xf32>
    %8 = vector.multi_reduction <add>, %7, %cst_6 [0] : vector<64x64xf32> to vector<64xf32>
    %9 = vector.shape_cast %8 : vector<64xf32> to vector<1x64xf32>
    %10 = tpu.concatenate %6, %9 in 0 : vector<1x64xf32>, vector<1x64xf32> -> vector<2x64xf32>
    %11 = vector.shape_cast %10 : vector<2x64xf32> to vector<1x2x64xf32>
    %c0_7 = arith.constant 0 : index
    %c0_8 = arith.constant 0 : index
    %c0_9 = arith.constant 0 : index
    %12 = vector.load %arg4[%c0_7, %c0_8, %c0_9] : memref<1x2x64xf32, #tpu.memory_space<vmem>>, vector<1x2x64xf32>
    tpu.vector_store %arg4[%c0_7, %c0_8, %c0_9], %11 {strides = array<i32>} : memref<1x2x64xf32, #tpu.memory_space<vmem>>, vector<1x2x64xf32>,
    return
  }
  func.func @transform_0(%arg0: i32) -> (i32, i32) {
    %c0_i32 = arith.constant 0 : i32
    %c0_i32_0 = arith.constant 0 : i32
    return %arg0, %c0_i32 : i32, i32
  }
  func.func @transform_1(%arg0: i32) -> (i32, i32) {
    %c0_i32 = arith.constant 0 : i32
    %c0_i32_0 = arith.constant 0 : i32
    %c0_i32_1 = arith.constant 0 : i32
    return %c0_i32, %c0_i32_0 : i32, i32
  }
  func.func @transform_2(%arg0: i32) -> (i32, i32) {
    %c0_i32 = arith.constant 0 : i32
    %c0_i32_0 = arith.constant 0 : i32
    return %arg0, %c0_i32 : i32, i32
  }
  func.func @transform_3(%arg0: i32) -> (i32, i32, i32) {
    %c0_i32 = arith.constant 0 : i32
    %c0_i32_0 = arith.constant 0 : i32
    %c0_i32_1 = arith.constant 0 : i32
    return %arg0, %c0_i32, %c0_i32_0 : i32, i32, i32
  }
}

</mosaic_0001>

<llo_original>
// kernel: tpu_custom_call.1
$region0: #{tpu_custom_call.1}
  #allocation0 [shape = 'u32[]', space=smem, size = 0x4, offset = 0x4, fixed_abs, tag = 'smem constant byte address 0x4 - core index']
  #allocation1 [shape = 'u32[72,128]{1,0:T(1,128)}', space=vmem, size = 0x9000, scoped, tag = 'internal scratch']
  %s0 = inlined_call_operand.vmem [shape: bf16[64,256], index: 0, kind: input, shape index: {}]
  %s1 = inlined_call_operand.vmem [shape: bf16[256,64], index: 1, kind: input, shape index: {}]
  %s2 = inlined_call_operand.hbm [shape: bf16[64,64], index: 2, kind: output, shape index: {0}]
  %s3 = inlined_call_operand.hbm [shape: f32[1,2,64], index: 3, kind: output, shape index: {1}]
  %4 = xla_tuple %s2, %s3
  %s5 = sld [smem:[#allocation0]]
  $region26: #{tpu_custom_call.1} parent=0
    _
  %s7 = ssub.s32 1, %s5
  %s8 = scalar_select 0, %s7, %s5
  $region1: #{tpu_custom_call.1} parent=0
    #allocation2 [shape = 'u8[16384]{0}', space=vmem, size = 0x4000, scoped, tag = 'output window, operand 0, single buffered']
    #allocation3 [shape = 's32[1]{0}', space=sflag, size = 0x4, scoped, tag = 'scoped memory for tpu_custom_call.1']
    #allocation4 [shape = 'u8[1024]{0}', space=vmem, size = 0x400, scoped, tag = 'output window, operand 1, single buffered']
    #allocation5 [shape = 's32[1]{0}', space=sflag, size = 0x4, scoped, tag = 'scoped memory for tpu_custom_call.1']
    %9 = vsyncpa [#allocation3], 0
    %10 = vsyncpa [#allocation5], 0
    // Predicated region
    $region2: #{tpu_custom_call.1} parent=1 // pred_check
      _
    $region3: #{tpu_custom_call.1} parent=1 // pred_check_branch
      %12 = sbr.rel (0) target = $region5
    $region4: #{tpu_custom_call.1} parent=1 // pred_region
      _
    $region5: #{tpu_custom_call.1} parent=1 // pred_fallthru
      _
    // Predicated region
    $region6: #{tpu_custom_call.1} parent=1 // pred_check
      _
    $region7: #{tpu_custom_call.1} parent=1 // pred_check_branch
      %14 = sbr.rel (0) target = $region9
    $region8: #{tpu_custom_call.1} parent=1 // pred_region
      _
    $region9: #{tpu_custom_call.1} parent=1 // pred_fallthru
      _
    %v15 = vld [vmem:[%s0] sm:$0xff]
    %v16 = vld [vmem:[%s0 + $0x8] sm:$0xff]
    %v17 = vld [vmem:[%s0 + $0x10] sm:$0xff]
    %v18 = vld [vmem:[%s0 + $0x18] sm:$0xff]
    %v19 = vld [vmem:[%s0 + $0x20] sm:$0xff]
    %v20 = vld [vmem:[%s0 + $0x28] sm:$0xff]
    %v21 = vld [vmem:[%s0 + $0x30] sm:$0xff]
    %v22 = vld [vmem:[%s0 + $0x38] sm:$0xff]
    %v23 = vld [vmem:[%s1] sm:$0xf]
    %v24 = vld [vmem:[%s1 + $0x4] sm:$0xf]
    %v25 = vld [vmem:[%s1 + $0x8] sm:$0xf]
    %v26 = vld [vmem:[%s1 + $0xc] sm:$0xf]
    %v27 = vld [vmem:[%s1 + $0x10] sm:$0xf]
    %v28 = vld [vmem:[%s1 + $0x14] sm:$0xf]
    %v29 = vld [vmem:[%s1 + $0x18] sm:$0xf]
    %v30 = vld [vmem:[%s1 + $0x1c] sm:$0xf]
    %v31 = vld [vmem:[%s1 + $0x20] sm:$0xf]
    %v32 = vld [vmem:[%s1 + $0x24] sm:$0xf]
    %v33 = vld [vmem:[%s1 + $0x28] sm:$0xf]
    %v34 = vld [vmem:[%s1 + $0x2c] sm:$0xf]
    %v35 = vld [vmem:[%s1 + $0x30] sm:$0xf]
    %v36 = vld [vmem:[%s1 + $0x34] sm:$0xf]
    %v37 = vld [vmem:[%s1 + $0x38] sm:$0xf]
    %v38 = vld [vmem:[%s1 + $0x3c] sm:$0xf]
    %v39 = vld [vmem:[%s1 + $0x40] sm:$0xf]
    %v40 = vld [vmem:[%s1 + $0x44] sm:$0xf]
    %v41 = vld [vmem:[%s1 + $0x48] sm:$0xf]
    %v42 = vld [vmem:[%s1 + $0x4c] sm:$0xf]
    %v43 = vld [vmem:[%s1 + $0x50] sm:$0xf]
    %v44 = vld [vmem:[%s1 + $0x54] sm:$0xf]
    %v45 = vld [vmem:[%s1 + $0x58] sm:$0xf]
    %v46 = vld [vmem:[%s1 + $0x5c] sm:$0xf]
    %v47 = vld [vmem:[%s1 + $0x60] sm:$0xf]
    %v48 = vld [vmem:[%s1 + $0x64] sm:$0xf]
    %v49 = vld [vmem:[%s1 + $0x68] sm:$0xf]
    %v50 = vld [vmem:[%s1 + $0x6c] sm:$0xf]
    %v51 = vld [vmem:[%s1 + $0x70] sm:$0xf]
    %v52 = vld [vmem:[%s1 + $0x74] sm:$0xf]
    %v53 = vld [vmem:[%s1 + $0x78] sm:$0xf]
    %v54 = vld [vmem:[%s1 + $0x7c] sm:$0xf]
    %v63 = vunpack.c.l.b16 %v15
    %v64 = vunpack.c.h.b16 %v15
    %v65 = vunpack.c.l.b16 %v16
    %v66 = vunpack.c.h.b16 %v16
    %v67 = vunpack.c.l.b16 %v17
    %v68 = vunpack.c.h.b16 %v17
    %v69 = vunpack.c.l.b16 %v18
    %v70 = vunpack.c.h.b16 %v18
    %v71 = vunpack.c.l.b16 %v19
    %v72 = vunpack.c.h.b16 %v19
    %v73 = vunpack.c.l.b16 %v20
    %v74 = vunpack.c.h.b16 %v20
    %v75 = vunpack.c.l.b16 %v21
    %v76 = vunpack.c.h.b16 %v21
    %v77 = vunpack.c.l.b16 %v22
    %v78 = vunpack.c.h.b16 %v22
    %v79 = vpack.c.b16 %v65, %v63
    %v80 = vpack.c.b16 %v66, %v64
    %v81 = vpack.c.b16 %v69, %v67
    %v82 = vpack.c.b16 %v70, %v68
    %v83 = vpack.c.b16 %v73, %v71
    %v84 = vpack.c.b16 %v74, %v72
    %v85 = vpack.c.b16 %v77, %v75
    %v86 = vpack.c.b16 %v78, %v76
    %v127 = vunpack.c.l.b16 %v23
    %v128 = vunpack.c.l.b16 %v24
    %v129 = vunpack.c.l.b16 %v25
    %v130 = vunpack.c.l.b16 %v26
    %v131 = vunpack.c.l.b16 %v27
    %v132 = vunpack.c.l.b16 %v28
    %v133 = vunpack.c.l.b16 %v29
    %v134 = vunpack.c.l.b16 %v30
    %v135 = vunpack.c.l.b16 %v31
    %v136 = vunpack.c.l.b16 %v32
    %v137 = vunpack.c.l.b16 %v33
    %v138 = vunpack.c.l.b16 %v34
    %v139 = vunpack.c.l.b16 %v35
    %v140 = vunpack.c.l.b16 %v36
    %v141 = vunpack.c.l.b16 %v37
    %v142 = vunpack.c.l.b16 %v38
    %v143 = vunpack.c.l.b16 %v39
    %v144 = vunpack.c.l.b16 %v40
    %v145 = vunpack.c.l.b16 %v41
    %v146 = vunpack.c.l.b16 %v42
    %v147 = vunpack.c.l.b16 %v43
    %v148 = vunpack.c.l.b16 %v44
    %v149 = vunpack.c.l.b16 %v45
    %v150 = vunpack.c.l.b16 %v46
    %v151 = vunpack.c.l.b16 %v47
    %v152 = vunpack.c.l.b16 %v48
    %v153 = vunpack.c.l.b16 %v49
    %v154 = vunpack.c.l.b16 %v50
    %v155 = vunpack.c.l.b16 %v51
    %v156 = vunpack.c.l.b16 %v52
    %v157 = vunpack.c.l.b16 %v53
    %v158 = vunpack.c.l.b16 %v54
    %v159 = vpack.c.b16 %v128, %v127
    %v160 = vpack.c.b16 %v130, %v129
    %v161 = vpack.c.b16 %v132, %v131
    %v162 = vpack.c.b16 %v134, %v133
    %v163 = vpack.c.b16 %v136, %v135
    %v164 = vpack.c.b16 %v138, %v137
    %v165 = vpack.c.b16 %v140, %v139
    %v166 = vpack.c.b16 %v142, %v141
    %v167 = vpack.c.b16 %v144, %v143
    %v168 = vpack.c.b16 %v146, %v145
    %v169 = vpack.c.b16 %v148, %v147
    %v170 = vpack.c.b16 %v150, %v149
    %v171 = vpack.c.b16 %v152, %v151
    %v172 = vpack.c.b16 %v154, %v153
    %v173 = vpack.c.b16 %v156, %v155
    %v174 = vpack.c.b16 %v158, %v157
    %191 = vmatpush.bf16.msra.mxu0 %v166
    %192 = vmatpush.bf16.msra.mxu0 %v165
    %193 = vmatpush.bf16.msra.mxu0 %v164
    %194 = vmatpush.bf16.msra.mxu0 %v163
    %195 = vmatpush.bf16.msra.mxu0 %v162
    %196 = vmatpush.bf16.msra.mxu0 %v161
    %197 = vmatpush.bf16.msra.mxu0 %v160
    %198 = vmatpush.bf16.msra.mxu0 %v159
    %199 = vmatmul.bf16.gmra.mxu0 %v79
    %v200 = vpop.f32.mrf.mxu0
    %v201 = vadd.f32 0.0, %v200
    %v202 = vpop.f32.mrf.mxu0
    %v203 = vadd.f32 0.0, %v202
    %204 = vmatmul.bf16.gmra.mxu0 %v81
    %v205 = vpop.f32.mrf.mxu0
    %v206 = vadd.f32 0.0, %v205
    %v207 = vpop.f32.mrf.mxu0
    %v208 = vadd.f32 0.0, %v207
    %209 = vmatmul.bf16.gmra.mxu0 %v83
    %v210 = vpop.f32.mrf.mxu0
    %v211 = vadd.f32 0.0, %v210
    %v212 = vpop.f32.mrf.mxu0
    %v213 = vadd.f32 0.0, %v212
    %214 = vmatmul.bf16.gmra.mxu0 %v85
    %v215 = vpop.f32.mrf.mxu0
    %v216 = vadd.f32 0.0, %v215
    %v217 = vpop.f32.mrf.mxu0
    %v218 = vadd.f32 0.0, %v217
    %219 = vdwg.mxu0
    %220 = vmatpush.bf16.msra.mxu0 %v174
    %221 = vmatpush.bf16.msra.mxu0 %v173
    %222 = vmatpush.bf16.msra.mxu0 %v172
    %223 = vmatpush.bf16.msra.mxu0 %v171
    %224 = vmatpush.bf16.msra.mxu0 %v170
    %225 = vmatpush.bf16.msra.mxu0 %v169
    %226 = vmatpush.bf16.msra.mxu0 %v168
    %227 = vmatpush.bf16.msra.mxu0 %v167
    %228 = vmatmul.bf16.gmra.mxu0 %v80
    %v229 = vpop.f32.mrf.mxu0
    %v230 = vadd.f32 %v201, %v229
    %v231 = vpop.f32.mrf.mxu0
    %v232 = vadd.f32 %v203, %v231
    %233 = vmatmul.bf16.gmra.mxu0 %v82
    %v234 = vpop.f32.mrf.mxu0
    %v235 = vadd.f32 %v206, %v234
    %v236 = vpop.f32.mrf.mxu0
    %v237 = vadd.f32 %v208, %v236
    %238 = vmatmul.bf16.gmra.mxu0 %v84
    %v239 = vpop.f32.mrf.mxu0
    %v240 = vadd.f32 %v211, %v239
    %v241 = vpop.f32.mrf.mxu0
    %v242 = vadd.f32 %v213, %v241
    %243 = vmatmul.bf16.gmra.mxu0 %v86
    %v244 = vpop.f32.mrf.mxu0
    %v245 = vadd.f32 %v216, %v244
    %v246 = vpop.f32.mrf.mxu0
    %v247 = vadd.f32 %v218, %v246
    %248 = vdwg.mxu0
    %v249 = vpack.c.bf16 %v230, %v230
    %v250 = vpack.c.bf16 %v232, %v232
    %v251 = vpack.c.bf16 %v235, %v235
    %v252 = vpack.c.bf16 %v237, %v237
    %v253 = vpack.c.bf16 %v240, %v240
    %v254 = vpack.c.bf16 %v242, %v242
    %v255 = vpack.c.bf16 %v245, %v245
    %v256 = vpack.c.bf16 %v247, %v247
    %vm257 = vcmask 519168
    %258 = vst.msk [vmem:[#allocation2] sm:$0xf] %vm257, %v249
    %259 = vst.msk [vmem:[#allocation2 + $0x4] sm:$0xf] %vm257, %v250
    %260 = vst.msk [vmem:[#allocation2 + $0x8] sm:$0xf] %vm257, %v251
    %261 = vst.msk [vmem:[#allocation2 + $0xc] sm:$0xf] %vm257, %v252
    %262 = vst.msk [vmem:[#allocation2 + $0x10] sm:$0xf] %vm257, %v253
    %263 = vst.msk [vmem:[#allocation2 + $0x14] sm:$0xf] %vm257, %v254
    %264 = vst.msk [vmem:[#allocation2 + $0x18] sm:$0xf] %vm257, %v255
    %265 = vst.msk [vmem:[#allocation2 + $0x1c] sm:$0xf] %vm257, %v256
    %vm266 = vcmask 523264
    %v267 = vsel %vm266, %v230, 0.0
    %v268 = vsel %vm266, %v232, 0.0
    %v269 = vadd.f32 %v267, %v268
    %v270 = vsel %vm266, %v235, 0.0
    %v271 = vadd.f32 %v269, %v270
    %v272 = vsel %vm266, %v237, 0.0
    %v273 = vadd.f32 %v271, %v272
    %v274 = vsel %vm266, %v240, 0.0
    %v275 = vadd.f32 %v273, %v274
    %v276 = vsel %vm266, %v242, 0.0
    %v277 = vadd.f32 %v275, %v276
    %v278 = vsel %vm266, %v245, 0.0
    %v279 = vadd.f32 %v277, %v278
    %v280 = vsel %vm266, %v247, 0.0
    %v281 = vadd.f32 %v279, %v280
    %v282 = vrot.slane %v281, 4
    %v283 = vadd.f32 %v281, %v282
    %v284 = vrot.slane %v283, 2
    %v285 = vadd.f32 %v283, %v284
    %v286 = vrot.slane %v285, 1
    %v287 = vadd.f32 %v285, %v286
    %v288 = vmul.f32 %v230, %v230
    %v289 = vmul.f32 %v232, %v232
    %v290 = vmul.f32 %v235, %v235
    %v291 = vmul.f32 %v237, %v237
    %v292 = vmul.f32 %v240, %v240
    %v293 = vmul.f32 %v242, %v242
    %v294 = vmul.f32 %v245, %v245
    %v295 = vmul.f32 %v247, %v247
    %v296 = vsel %vm266, %v288, 0.0
    %v297 = vsel %vm266, %v289, 0.0
    %v298 = vadd.f32 %v296, %v297
    %v299 = vsel %vm266, %v290, 0.0
    %v300 = vadd.f32 %v298, %v299
    %v301 = vsel %vm266, %v291, 0.0
    %v302 = vadd.f32 %v300, %v301
    %v303 = vsel %vm266, %v292, 0.0
    %v304 = vadd.f32 %v302, %v303
    %v305 = vsel %vm266, %v293, 0.0
    %v306 = vadd.f32 %v304, %v305
    %v307 = vsel %vm266, %v294, 0.0
    %v308 = vadd.f32 %v306, %v307
    %v309 = vsel %vm266, %v295, 0.0
    %v310 = vadd.f32 %v308, %v309
    %v311 = vrot.slane %v310, 4
    %v312 = vadd.f32 %v310, %v311
    %v313 = vrot.slane %v312, 2
    %v314 = vadd.f32 %v312, %v313
    %v315 = vrot.slane %v314, 1
    %v316 = vadd.f32 %v314, %v315
    %vm317 = vcmask 1040384
    %v318 = vsel %vm317, %v287, %v316
    %vm319 = vcmask 517120
    %320 = vst.msk [vmem:[#allocation4] sm:$0x3] %vm319, %v318
    // Predicated region
    $region10: #{tpu_custom_call.1} parent=1 // pred_check
      _
    $region11: #{tpu_custom_call.1} parent=1 // pred_check_branch
      %322 = sbr.rel (0) target = $region13
    $region12: #{tpu_custom_call.1} parent=1 // pred_region
      %324 = vsyncadd [#allocation3], 0
      %s325 = sshll.u32 [#allocation2], 4
      %s326 = int_to_ptr.vmem [resolvable:$true] %s325
      %s327 = sshll.u32 %s2, 4
      %s328 = int_to_ptr.hbm [resolvable:$true] %s327
      %333 = dma.vmem_to_hbm [thread:$0]  %s326, 512, %s328, [#allocation3], 64, 64, 4
    $region13: #{tpu_custom_call.1} parent=1 // pred_fallthru
      _
    // Predicated region
    $region14: #{tpu_custom_call.1} parent=1 // pred_check
      _
    $region15: #{tpu_custom_call.1} parent=1 // pred_check_branch
      %335 = sbr.rel (0) target = $region17
    $region16: #{tpu_custom_call.1} parent=1 // pred_region
      %337 = vsyncadd [#allocation5], 0
      %s339 = sshll.u32 [#allocation4], 4
      %s340 = int_to_ptr.vmem [resolvable:$true] %s339
      %s341 = sshll.u32 %s3, 4
      %s342 = int_to_ptr.hbm [resolvable:$true] %s341
      %344 = dma.vmem_to_hbm [thread:$0]  %s340, 32, %s342, [#allocation5]
    $region17: #{tpu_custom_call.1} parent=1 // pred_fallthru
      _
    // Predicated region
    $region18: #{tpu_custom_call.1} parent=1 // pred_check
      _
    $region19: #{tpu_custom_call.1} parent=1 // pred_check_branch
      %346 = sbr.rel (0) target = $region21
    $region20: #{tpu_custom_call.1} parent=1 // pred_region
      %348 = dma.done [#allocation3], 512
    $region21: #{tpu_custom_call.1} parent=1 // pred_fallthru
      _
    // Predicated region
    $region22: #{tpu_custom_call.1} parent=1 // pred_check
      _
    $region23: #{tpu_custom_call.1} parent=1 // pred_check_branch
      %350 = sbr.rel (0) target = $region25
    $region24: #{tpu_custom_call.1} parent=1 // pred_region
      %352 = dma.done [#allocation5], 32
    $region25: #{tpu_custom_call.1} parent=1 // pred_fallthru
      _
    %353 = vsyncpa [#allocation3], 1
    %354 = vsyncpa [#allocation5], 1

</llo_original>
